<compile_context>
chip_gen: v7x
topology: tpu7x:2x2x1
jax: 0.10.0
libtpu: 0.0.40
codegen_flags: <defaults>
</compile_context>

<pallas_src>
import functools

import jax
import jax.numpy as jnp
from jax import lax
from jax.experimental import pallas as pl
from jax.experimental.pallas import tpu as pltpu


def _rmsnorm_kernel(x_ref, w_ref, o_ref, *, eps, exact_rounding):
    # x_ref: (block_rows, dim) input tile
    # w_ref: (1, dim) weight (resident, broadcast over rows)
    # o_ref: (block_rows, dim) output tile
    xf = x_ref[...].astype(jnp.float32)                      # x.float()
    inv_dim = 1.0 / x_ref.shape[-1]
    ssq = jnp.sum(xf * xf, axis=-1, keepdims=True)           # x.pow(2).sum(-1)
    # Fold 1/dim into the rsqrt argument: one fewer broadcasted multiply.
    scale = lax.rsqrt(ssq * inv_dim + eps)                   # rsqrt(mean + eps)
    w = w_ref[...].astype(jnp.float32)

    if exact_rounding and x_ref.dtype != jnp.float32:
        # Match torch exactly: .type_as(x) rounds to the input dtype before
        # the (promoting) weight multiply.
        normed = (xf * scale).astype(x_ref.dtype)
        out = normed.astype(jnp.float32) * w
    else:
        # f32 inputs (round-trip is a no-op) or caller opted out of exact
        # rounding: skip the two extra casts per element.
        out = (xf * scale) * w
    o_ref[...] = out.astype(o_ref.dtype)


def _sublane_granule(dtype):
    # Sub-32-bit dtypes pack along sublanes: 8 rows for 4-byte, 16 for 2-byte,
    # 32 for 1-byte elements.
    return max(8, 32 // jnp.dtype(dtype).itemsize)


def _tpu_hw_params():
    """Returns (per-core VMEM capacity bytes, is_v7x). Conservative fallbacks."""
    kind = ""
    try:
        kind = jax.devices()[0].device_kind.lower()
    except Exception:
        pass
    is_v7x = ("v7" in kind) or ("7x" in kind)
    if is_v7x:
        vmem_cap = 64 << 20
    elif ("v2" in kind) or ("v3" in kind):
        vmem_cap = 16 << 20
    elif ("v4" in kind) or ("v5" in kind) or ("v6" in kind):
        vmem_cap = 128 << 20
    else:
        vmem_cap = 64 << 20  # unknown chip: stay conservative
    # If runtime introspection is available, only use it to *lower* the cap
    # (never raise it), in case it reports per-chip rather than per-core.
    try:
        cap = int(pltpu.get_tpu_info().vmem_capacity_bytes)
        if cap > 0:
            vmem_cap = min(vmem_cap, cap)
    except Exception:
        pass
    return vmem_cap, is_v7x


def rmsnorm(x, weight, eps=1e-6, *, out_dtype=None, exact_rounding=True,
            block_rows=None, vmem_limit_bytes=None):
    """RMSNorm over the last axis of x, matching the PyTorch module.

    By default the output dtype follows torch type promotion of
    `normed(x) * weight` (e.g. bf16 input with f32 weight -> f32 output).
    Pass `out_dtype=` to override (e.g. bf16 output to cut HBM write traffic),
    and `exact_rounding=False` to skip the .type_as(x) round-trip casts.
    """
    orig_shape = x.shape
    dim = orig_shape[-1]
    assert weight.shape == (dim,)

    if out_dtype is None:
        out_dtype = jnp.result_type(x.dtype, weight.dtype)
    out_dtype = jnp.dtype(out_dtype)

    x2d = x.reshape(-1, dim)
    rows = x2d.shape[0]
    if rows == 0:
        # Degenerate empty input: nothing to normalize.
        return jnp.zeros(orig_shape[:-1] + (dim,), dtype=out_dtype)

    w2d = weight.reshape(1, dim)

    in_size = jnp.dtype(x.dtype).itemsize
    out_size = out_dtype.itemsize
    granule = max(_sublane_granule(x.dtype), _sublane_granule(out_dtype))
    rows_rounded = ((rows + granule - 1) // granule) * granule

    vmem_cap, is_v7x = _tpu_hw_params()

    # Per-row VMEM bytes:
    #   * double-buffered input + output tiles (the pipelined I/O), plus
    #   * in-kernel intermediates that live across the lane reduction:
    #     f32 xf, one f32 temp (xf*scale / product), and the rounded temp.
    io_per_row = 2 * dim * (in_size + out_size)
    interm_per_row = dim * (4 + 4 + in_size)
    per_row = io_per_row + interm_per_row

    # Size the row tile purely by bytes (no fixed row cap): use ~3/4 of the
    # per-core VMEM for tiles + intermediates, leave the rest for the weight,
    # semaphores and compiler scratch.
    if block_rows is None:
        usable = (vmem_cap * 3) // 4
        block_rows = max(granule, usable // per_row)
    block_rows = max(granule, (block_rows // granule) * granule)
    block_rows = min(block_rows, rows_rounded)

    # Ragged last block is handled by Pallas (masked writes); no host padding.
    grid = (pl.cdiv(rows, block_rows),)

    if vmem_limit_bytes is None:
        io_tile = block_rows * dim * (in_size + out_size)
        usage = 2 * io_tile + block_rows * interm_per_row + dim * 4 + (8 << 20)
        vmem_limit_bytes = int(min(vmem_cap - (2 << 20), max(32 << 20, usage)))

    # On v7x (2 TensorCores per chip) ask for the row axis to be sharded
    # across cores; elsewhere plain "parallel".
    row_sem = getattr(pltpu, "CORE_PARALLEL", "parallel") if is_v7x else "parallel"

    # TODO(synk): if dim is not a multiple of 128 (not the case for real model
    # dims like 4096/8192), stores are partially masked; a lane-packing rewrite
    # could recover the store path, but is not needed for correctness.
    out = pl.pallas_call(
        functools.partial(_rmsnorm_kernel, eps=eps, exact_rounding=exact_rounding),
        out_shape=jax.ShapeDtypeStruct((rows, dim), out_dtype),
        grid_spec=pltpu.PrefetchScalarGridSpec(
            num_scalar_prefetch=0,
            grid=grid,
            in_specs=[
                pl.BlockSpec((block_rows, dim), lambda i: (i, 0)),
                pl.BlockSpec((1, dim), lambda i: (0, 0)),   # weight resident
            ],
            out_specs=pl.BlockSpec((block_rows, dim), lambda i: (i, 0)),
        ),
        compiler_params=pltpu.CompilerParams(
            dimension_semantics=(row_sem,),
            vmem_limit_bytes=vmem_limit_bytes,
        ),
    )(x2d, w2d)

    return out.reshape(orig_shape[:-1] + (dim,))


def rmsnorm_ref(x, weight, eps=1e-6):
    xf = x.astype(jnp.float32)
    ms = jnp.mean(xf * xf, axis=-1, keepdims=True)
    normed = (xf * lax.rsqrt(ms + eps)).astype(x.dtype)
    out_dtype = jnp.result_type(x.dtype, weight.dtype)
    return normed.astype(out_dtype) * weight.astype(out_dtype)


if __name__ == "__main__":
    key = jax.random.PRNGKey(0)

    # Small f32 case consistent with the module's forward (batch, seq, hidden).
    batch, seq, hidden = 2, 8, 32
    x = jax.random.normal(key, (batch, seq, hidden), dtype=jnp.float32)
    weight = jnp.ones((hidden,), dtype=jnp.float32)  # nn.Parameter(torch.ones(dim))

    out = jax.block_until_ready(rmsnorm(x, weight))
    ref = rmsnorm_ref(x, weight)
    assert out.shape == x.shape and out.dtype == jnp.float32
    assert jnp.allclose(out, ref, atol=1e-5, rtol=1e-5)

    # bf16 input + f32 weight: exercises the exact .type_as(x) rounding path
    # and torch type promotion (f32 output).
    xb = jax.random.normal(jax.random.PRNGKey(1), (2, 8, 256), dtype=jnp.bfloat16)
    wb = jnp.ones((256,), dtype=jnp.float32) * 1.5
    outb = jax.block_until_ready(rmsnorm(xb, wb))
    refb = rmsnorm_ref(xb, wb)
    assert outb.shape == xb.shape and outb.dtype == jnp.float32
    assert jnp.allclose(outb, refb, atol=1e-2, rtol=1e-2)

    # bf16 output requested (write-bandwidth saver) with a ragged row count
    # (15 rows, not a sublane-granule multiple) to exercise the masked store.
    xc = jax.random.normal(jax.random.PRNGKey(2), (3, 5, 256), dtype=jnp.bfloat16)
    outc = jax.block_until_ready(rmsnorm(xc, wb, out_dtype=jnp.bfloat16))
    refc = rmsnorm_ref(xc, wb).astype(jnp.bfloat16)
    assert outc.shape == xc.shape and outc.dtype == jnp.bfloat16
    assert jnp.allclose(outc.astype(jnp.float32), refc.astype(jnp.float32),
                        atol=2e-2, rtol=2e-2)

    print("KERNEL_OK")
</pallas_src>

<mosaic_0001>
module attributes {stable_mosaic.version = 11 : i64} {
  func.func @_rmsnorm_kernel(%arg0: i32, %arg1: memref<16x32xf32, #tpu.memory_space<vmem>>, %arg2: memref<1x32xf32, #tpu.memory_space<vmem>>, %arg3: memref<16x32xf32, #tpu.memory_space<vmem>>) attributes {dimension_semantics = [#tpu.dimension_semantics<parallel>], iteration_bounds = array<i64: 1>, scalar_prefetch = 0 : i64, scratch_operands = 0 : i64, tpu.core_type = #tpu.core_type<tc>, window_params = [{transform_indices = @transform_0, window_bounds = array<i64: 16, 32>}, {pipeline_mode = #tpu.pipeline_mode<synchronous>, transform_indices = @transform_1, window_bounds = array<i64: 1, 32>}, {transform_indices = @transform_2, window_bounds = array<i64: 16, 32>}]} {
    %c0 = arith.constant 0 : index
    %c0_0 = arith.constant 0 : index
    %0 = vector.load %arg1[%c0, %c0_0] : memref<16x32xf32, #tpu.memory_space<vmem>>, vector<16x32xf32>
    %1 = arith.mulf %0, %0 : vector<16x32xf32>
    %cst = arith.constant dense<0.000000e+00> : vector<16xf32>
    %2 = vector.multi_reduction <add>, %1, %cst [1] : vector<16x32xf32> to vector<16xf32>
    %3 = vector.shape_cast %2 : vector<16xf32> to vector<16x1xf32>
    %cst_1 = arith.constant 3.125000e-02 : f32
    %4 = vector.broadcast %cst_1 : f32 to vector<16x1xf32>
    %5 = arith.mulf %3, %4 : vector<16x1xf32>
    %cst_2 = arith.constant 9.99999997E-7 : f32
    %6 = vector.broadcast %cst_2 : f32 to vector<16x1xf32>
    %7 = arith.addf %5, %6 : vector<16x1xf32>
    %8 = math.rsqrt %7 : vector<16x1xf32>
    %c0_3 = arith.constant 0 : index
    %c0_4 = arith.constant 0 : index
    %9 = vector.load %arg2[%c0_3, %c0_4] : memref<1x32xf32, #tpu.memory_space<vmem>>, vector<1x32xf32>
    %10 = vector.broadcast %8 : vector<16x1xf32> to vector<16x32xf32>
    %11 = arith.mulf %0, %10 : vector<16x32xf32>
    %12 = vector.broadcast %9 : vector<1x32xf32> to vector<16x32xf32>
    %13 = arith.mulf %11, %12 : vector<16x32xf32>
    %c0_5 = arith.constant 0 : index
    %c0_6 = arith.constant 0 : index
    %14 = vector.load %arg3[%c0_5, %c0_6] : memref<16x32xf32, #tpu.memory_space<vmem>>, vector<16x32xf32>
    tpu.vector_store %arg3[%c0_5, %c0_6], %13 {strides = array<i32>} : memref<16x32xf32, #tpu.memory_space<vmem>>, vector<16x32xf32>,
    return
  }
  func.func @transform_0(%arg0: i32) -> (i32, i32) {
    %c0_i32 = arith.constant 0 : i32
    %c0_i32_0 = arith.constant 0 : i32
    return %arg0, %c0_i32 : i32, i32
  }
  func.func @transform_1(%arg0: i32) -> (i32, i32) {
    %c0_i32 = arith.constant 0 : i32
    %c0_i32_0 = arith.constant 0 : i32
    %c0_i32_1 = arith.constant 0 : i32
    return %c0_i32, %c0_i32_0 : i32, i32
  }
  func.func @transform_2(%arg0: i32) -> (i32, i32) {
    %c0_i32 = arith.constant 0 : i32
    %c0_i32_0 = arith.constant 0 : i32
    return %arg0, %c0_i32 : i32, i32
  }
}

</mosaic_0001>

<llo_original>
// kernel: tpu_custom_call.1
$region0: #{tpu_custom_call.1}
  #allocation0 [shape = 'u32[]', space=smem, size = 0x4, offset = 0x4, fixed_abs, tag = 'smem constant byte address 0x4 - core index']
  #allocation1 [shape = 'u32[144,128]{1,0:T(1,128)}', space=vmem, size = 0x12000, scoped, tag = 'internal scratch']
  %s0 = inlined_call_operand.hbm [shape: f32[16,32], index: 0, kind: input, shape index: {}]
  %s1 = inlined_call_operand.vmem [shape: f32[1,32], index: 1, kind: input, shape index: {}]
  %s2 = inlined_call_operand.hbm [shape: f32[16,32], index: 2, kind: output, shape index: {}]
  %s3 = sld [smem:[#allocation0]]
  $region22: #{tpu_custom_call.1} parent=0
    _
  %s5 = ssub.s32 1, %s3
  %s6 = scalar_select 0, %s5, %s3
  $region1: #{tpu_custom_call.1} parent=0
    #allocation2 [shape = 'u8[8192]{0}', space=vmem, size = 0x2000, scoped, tag = 'input window, operand 0, single buffered']
    #allocation3 [shape = 's32[1]{0}', space=sflag, size = 0x4, scoped, tag = 'scoped memory for tpu_custom_call.1']
    #allocation4 [shape = 's32[1]{0}', space=sflag, size = 0x4, scoped, tag = 'scoped memory for tpu_custom_call.1']
    #allocation5 [shape = 'u8[8192]{0}', space=vmem, size = 0x2000, scoped, tag = 'output window, operand 0, single buffered']
    %7 = vsyncpa [#allocation3], 0
    %8 = vsyncpa [#allocation4], 0
    // Predicated region
    $region2: #{tpu_custom_call.1} parent=1 // pred_check
      _
    $region3: #{tpu_custom_call.1} parent=1 // pred_check_branch
      %10 = sbr.rel (0) target = $region5
    $region4: #{tpu_custom_call.1} parent=1 // pred_region
      %s12 = ssub.s32 256, 256
      %13 = vsyncadd [#allocation3], %s12
      %s14 = sshll.u32 [#allocation2], 4
      %s15 = int_to_ptr.vmem [resolvable:$true] %s14
      %20 = dma.hbm_to_vmem [thread:$0]  %s0, 256, %s15, [#allocation3], 128, 128, 8
    $region5: #{tpu_custom_call.1} parent=1 // pred_fallthru
      _
    // Predicated region
    $region6: #{tpu_custom_call.1} parent=1 // pred_check
      _
    $region7: #{tpu_custom_call.1} parent=1 // pred_check_branch
      %22 = sbr.rel (0) target = $region9
    $region8: #{tpu_custom_call.1} parent=1 // pred_region
      _
    $region9: #{tpu_custom_call.1} parent=1 // pred_fallthru
      _
    // Predicated region
    $region10: #{tpu_custom_call.1} parent=1 // pred_check
      _
    $region11: #{tpu_custom_call.1} parent=1 // pred_check_branch
      %24 = sbr.rel (0) target = $region13
    $region12: #{tpu_custom_call.1} parent=1 // pred_region
      %25 = dma.done [#allocation3], 256
    $region13: #{tpu_custom_call.1} parent=1 // pred_fallthru
      _
    %v26 = vld [vmem:[#allocation2] sm:$0xff]
    %v27 = vld [vmem:[#allocation2 + $0x8] sm:$0xff]
    %v28 = vmul.f32 %v26, %v26
    %v29 = vmul.f32 %v27, %v27
    %vm30 = vcmask 261120
    %v31 = vsel %vm30, %v28, 0.0
    %32 = vadd.xlane.f32.xlu0 %v31
    %v33 = vpop.xlane.xlu0 %32
    %v34 = vsel %vm30, %v29, 0.0
    %35 = vadd.xlane.f32.xlu0 %v34
    %v36 = vpop.xlane.xlu0 %35
    %v37 = vmul.f32 %v33, 0.03125
    %v38 = vmul.f32 %v36, 0.03125
    %v39 = vadd.f32 %v37, 1e-06
    %v40 = vadd.f32 %v38, 1e-06
    %v41 = vrsqrt.pop %v39
    %v42 = vrsqrt.pop %v40
    %v43 = vld [vmem:[%s1] sm:$0x1]
    %v44 = vmul.f32 %v26, %v41
    %v45 = vmul.f32 %v27, %v42
    %v47 = vlaneseq
    %v48 = vshrl.u32 %v47, 7
    %v49 = vsub.s32 0, %v48
    %v50 = vrot.slane %v43, %v49
    %v52 = vmul.f32 %v44, %v50
    %v53 = vmul.f32 %v45, %v50
    %54 = vst.msk [vmem:[#allocation5] sm:$0xff] %vm30, %v52
    %55 = vst.msk [vmem:[#allocation5 + $0x8] sm:$0xff] %vm30, %v53
    // Predicated region
    $region14: #{tpu_custom_call.1} parent=1 // pred_check
      _
    $region15: #{tpu_custom_call.1} parent=1 // pred_check_branch
      %57 = sbr.rel (0) target = $region17
    $region16: #{tpu_custom_call.1} parent=1 // pred_region
      %s59 = ssub.s32 256, 256
      %60 = vsyncadd [#allocation4], %s59
      %s61 = sshll.u32 [#allocation5], 4
      %s62 = int_to_ptr.vmem [resolvable:$true] %s61
      %67 = dma.vmem_to_hbm [thread:$0]  %s62, 256, %s2, [#allocation4], 128, 128, 8
    $region17: #{tpu_custom_call.1} parent=1 // pred_fallthru
      _
    // Predicated region
    $region18: #{tpu_custom_call.1} parent=1 // pred_check
      _
    $region19: #{tpu_custom_call.1} parent=1 // pred_check_branch
      %69 = sbr.rel (0) target = $region21
    $region20: #{tpu_custom_call.1} parent=1 // pred_region
      %70 = dma.done [#allocation4], 256
    $region21: #{tpu_custom_call.1} parent=1 // pred_fallthru
      _
    %71 = vsyncpa [#allocation3], 1
    %72 = vsyncpa [#allocation4], 1

</llo_original>
